<compile_context>
chip_gen: v5e
topology: v5e:2x2
jax: 0.10.0
libtpu: 0.0.40
codegen_flags: <defaults>
</compile_context>

<pallas_src>
import jax
import jax.numpy as jnp
import numpy as np
from jax.experimental import pallas as pl
from jax.experimental.pallas import tpu as pltpu

MIN_STD = 0.1


def cnp_kernel(obs_ref, tgt_ref, mask_ref,
               we0_ref, be0_ref, we1_ref, be1_ref, we2_ref, be2_ref,
               wq0r_ref, wq0x_ref, bq0_ref, wq1_ref, bq1_ref, wq2_ref, bq2_ref,
               out_ref):
    f32 = jnp.float32
    bt, n_ctx, d_in = obs_ref.shape
    _, n_tgt, d_x = tgt_ref.shape
    hidden = we0_ref.shape[1]
    d_y = out_ref.shape[-1] // 2
    cdt = we0_ref.dtype                     # matmul-operand (compute) dtype

    # ---------------- encoder: two ReLU layers on bt*n_ctx fused rows ----------------
    obs = obs_ref[...].reshape(bt * n_ctx, d_in).astype(cdt)
    h = jnp.maximum(jnp.dot(obs, we0_ref[...], preferred_element_type=f32)
                    + be0_ref[...], 0.0)
    h = jnp.maximum(jnp.dot(h.astype(cdt), we1_ref[...], preferred_element_type=f32)
                    + be1_ref[...], 0.0)                        # (bt*n_ctx, H) f32

    # ---- masked mean per batch; the linear we2 layer is hoisted AFTER the mean ----
    h3 = h.reshape(bt, n_ctx, hidden)
    m = mask_ref[...]                                           # (bt, n_ctx, 1)
    h_mean = jnp.sum(h3 * m, axis=1) / jnp.sum(m, axis=1)       # (bt, H)
    r = jnp.dot(h_mean.astype(cdt), we2_ref[...], preferred_element_type=f32) \
        + be2_ref[...]                                          # (bt, H)

    # ---------------- decoder: split wq0 -> no concat, no broadcast_to ----------------
    rq = jnp.dot(r.astype(cdt), wq0r_ref[...], preferred_element_type=f32) \
        + bq0_ref[...]                                          # (bt, H)
    tgt = tgt_ref[...].reshape(bt * n_tgt, d_x).astype(cdt)
    xq = jnp.dot(tgt, wq0x_ref[...], preferred_element_type=f32)     # (bt*n_tgt, H)
    q = jnp.maximum(xq.reshape(bt, n_tgt, hidden) + rq[:, None, :], 0.0)
    q = q.reshape(bt * n_tgt, hidden)
    q = jnp.maximum(jnp.dot(q.astype(cdt), wq1_ref[...], preferred_element_type=f32)
                    + bq1_ref[...], 0.0)
    q = jnp.dot(q.astype(cdt), wq2_ref[...], preferred_element_type=f32) \
        + bq2_ref[...]                                          # (bt*n_tgt, 2*d_y)

    # softplus + min_std only on the std half, via a lane mask (lane-dense store)
    col = jax.lax.broadcasted_iota(jnp.int32, q.shape, dimension=1)
    out = jnp.where(col < d_y, q, jax.nn.softplus(q) + MIN_STD)
    out_ref[...] = out.reshape(bt, n_tgt, 2 * d_y).astype(out_ref.dtype)


def _choose_batch_block(n_batch, n_ctx, n_tgt, target_rows=512):
    """Largest divisor of n_batch giving ~target_rows matmul rows per grid step,
    while keeping at least 2 grid steps (so both v7x TensorCores get work)."""
    rows = max(n_ctx, n_tgt, 1)
    cap = max(1, target_rows // rows)
    if n_batch >= 2:
        cap = min(cap, n_batch // 2)
    cap = max(1, min(cap, n_batch))
    bt = 1
    for d in range(1, cap + 1):
        if n_batch % d == 0:
            bt = d
    return bt


def cnp_forward(observation, target, params, observation_mask=None,
                *, compute_dtype=jnp.float32, batch_block=None):
    """observation: (B, n_ctx, d_x+d_y), target: (B, n_tgt, d_x),
    observation_mask: (B, n_ctx) or None. Returns (mean, std), each (B, n_tgt, d_y)."""
    n_batch, n_ctx, d_in = observation.shape
    _, n_tgt, d_x = target.shape
    hidden = params["we0"].shape[1]
    d_y = params["wq2"].shape[1] // 2

    if observation_mask is None:
        # mask of ones -> sum/count == mean over context; identical semantics.
        observation_mask = jnp.ones((n_batch, n_ctx), jnp.float32)
    mask3 = observation_mask.astype(jnp.float32)[..., None]          # (B, n_ctx, 1)

    bt = batch_block if batch_block is not None else _choose_batch_block(
        n_batch, n_ctx, n_tgt)
    grid = (pl.cdiv(n_batch, bt),)

    cdt = compute_dtype
    # split wq0 into r-rows and target-rows (one-time XLA slice, kills the concat)
    wq0_r = params["wq0"][:hidden].astype(cdt)
    wq0_x = params["wq0"][hidden:].astype(cdt)

    weight_args = [
        params["we0"].astype(cdt), params["be0"],
        params["we1"].astype(cdt), params["be1"],
        params["we2"].astype(cdt), params["be2"],
        wq0_r, wq0_x, params["bq0"],
        params["wq1"].astype(cdt), params["bq1"],
        params["wq2"].astype(cdt), params["bq2"],
    ]

    def full_spec(arr):
        nd = arr.ndim
        return pl.BlockSpec(arr.shape, lambda b, _n=nd: (0,) * _n)

    weight_specs = [full_spec(a) for a in weight_args]

    grid_spec = pltpu.PrefetchScalarGridSpec(
        num_scalar_prefetch=0,
        grid=grid,
        in_specs=[pl.BlockSpec((bt, n_ctx, d_in), lambda b: (b, 0, 0)),
                  pl.BlockSpec((bt, n_tgt, d_x), lambda b: (b, 0, 0)),
                  pl.BlockSpec((bt, n_ctx, 1), lambda b: (b, 0, 0))] + weight_specs,
        out_specs=pl.BlockSpec((bt, n_tgt, 2 * d_y), lambda b: (b, 0, 0)),
    )

    out = pl.pallas_call(
        cnp_kernel,
        out_shape=jax.ShapeDtypeStruct((n_batch, n_tgt, 2 * d_y), jnp.float32),
        grid_spec=grid_spec,
        compiler_params=pltpu.CompilerParams(dimension_semantics=("parallel",)),
    )(observation, target, mask3, *weight_args)

    # lane-dense kernel output; mean/std split is a free XLA slice here.
    mean = out[..., :d_y]
    std = out[..., d_y:]
    return mean, std


def init_params(key, d_x, d_y, hidden_size):
    """Deterministic torch.nn.Linear-style init; weights stored as (in, out)."""
    def linear(k, fan_in, fan_out):
        kw, kb = jax.random.split(k)
        bound = 1.0 / np.sqrt(fan_in)
        w = jax.random.uniform(kw, (fan_in, fan_out), jnp.float32, -bound, bound)
        b = jax.random.uniform(kb, (1, fan_out), jnp.float32, -bound, bound)
        return w, b

    keys = jax.random.split(key, 6)
    p = {}
    p["we0"], p["be0"] = linear(keys[0], d_x + d_y, hidden_size)
    p["we1"], p["be1"] = linear(keys[1], hidden_size, hidden_size)
    p["we2"], p["be2"] = linear(keys[2], hidden_size, hidden_size)
    p["wq0"], p["bq0"] = linear(keys[3], hidden_size + d_x, hidden_size)
    p["wq1"], p["bq1"] = linear(keys[4], hidden_size, hidden_size)
    p["wq2"], p["bq2"] = linear(keys[5], hidden_size, 2 * d_y)
    return p


def cnp_forward_ref(obs, tgt, p, mask=None):
    """Pure-JAX reference of the same forward pass (for sanity checking)."""
    h = jnp.maximum(obs @ p["we0"] + p["be0"], 0.0)
    h = jnp.maximum(h @ p["we1"] + p["be1"], 0.0)
    h = h @ p["we2"] + p["be2"]
    if mask is None:
        r = h.mean(axis=1)
    else:
        r = (h * mask[..., None]).sum(axis=1) / mask.sum(axis=1, keepdims=True)
    n_tgt = tgt.shape[1]
    r_rep = jnp.repeat(r[:, None, :], n_tgt, axis=1)
    hc = jnp.concatenate([r_rep, tgt], axis=-1)
    q = jnp.maximum(hc @ p["wq0"] + p["bq0"], 0.0)
    q = jnp.maximum(q @ p["wq1"] + p["bq1"], 0.0)
    q = q @ p["wq2"] + p["bq2"]
    d_y = p["wq2"].shape[1] // 2
    return q[..., :d_y], jax.nn.softplus(q[..., d_y:]) + MIN_STD


if __name__ == "__main__":
    d_x, d_y = 2, 1
    hidden_size = 32
    n_batch, n_ctx, n_tgt = 2, 8, 10

    key = jax.random.PRNGKey(0)
    k_obs, k_tgt, k_params = jax.random.split(key, 3)

    observation = jax.random.normal(k_obs, (n_batch, n_ctx, d_x + d_y), jnp.float32)
    target = jax.random.normal(k_tgt, (n_batch, n_tgt, d_x), jnp.float32)
    params = init_params(k_params, d_x, d_y, hidden_size)

    # ---- f32 path, no mask ----
    mean, std = cnp_forward(observation, target, params, observation_mask=None)
    jax.block_until_ready((mean, std))
    mean_r, std_r = cnp_forward_ref(observation, target, params, mask=None)
    np.testing.assert_allclose(np.asarray(mean), np.asarray(mean_r), rtol=2e-3, atol=2e-3)
    np.testing.assert_allclose(np.asarray(std), np.asarray(std_r), rtol=2e-3, atol=2e-3)

    # ---- f32 path, with an observation mask (checks masked mean + hoisted we2) ----
    obs_mask = jnp.array([[1, 1, 1, 1, 1, 1, 0, 0],
                          [1, 1, 1, 1, 1, 1, 1, 1]], dtype=jnp.float32)
    mean_m, std_m = cnp_forward(observation, target, params, observation_mask=obs_mask)
    jax.block_until_ready((mean_m, std_m))
    mean_mr, std_mr = cnp_forward_ref(observation, target, params, mask=obs_mask)
    np.testing.assert_allclose(np.asarray(mean_m), np.asarray(mean_mr), rtol=2e-3, atol=2e-3)
    np.testing.assert_allclose(np.asarray(std_m), np.asarray(std_mr), rtol=2e-3, atol=2e-3)

    # ---- bf16 matmul operands (f32 accumulation) ----
    mean_b, std_b = cnp_forward(observation, target, params, observation_mask=None,
                                compute_dtype=jnp.bfloat16)
    jax.block_until_ready((mean_b, std_b))
    np.testing.assert_allclose(np.asarray(mean_b), np.asarray(mean_r), rtol=5e-2, atol=5e-2)
    np.testing.assert_allclose(np.asarray(std_b), np.asarray(std_r), rtol=5e-2, atol=5e-2)

    # TODO(synk): nll_loss (Normal log-prob + masked mean) is a training-time
    # scalar reduction left in plain JAX; only forward() is kernelized.
    print("KERNEL_OK")
</pallas_src>

<mosaic_0001>
module attributes {stable_mosaic.version = 11 : i64} {
  func.func @cnp_kernel(%arg0: i32, %arg1: memref<1x8x3xf32, #tpu.memory_space<vmem>>, %arg2: memref<1x10x2xf32, #tpu.memory_space<vmem>>, %arg3: memref<1x8x1xf32, #tpu.memory_space<vmem>>, %arg4: memref<3x32xf32, #tpu.memory_space<vmem>>, %arg5: memref<1x32xf32, #tpu.memory_space<vmem>>, %arg6: memref<32x32xf32, #tpu.memory_space<vmem>>, %arg7: memref<1x32xf32, #tpu.memory_space<vmem>>, %arg8: memref<32x32xf32, #tpu.memory_space<vmem>>, %arg9: memref<1x32xf32, #tpu.memory_space<vmem>>, %arg10: memref<32x32xf32, #tpu.memory_space<vmem>>, %arg11: memref<2x32xf32, #tpu.memory_space<vmem>>, %arg12: memref<1x32xf32, #tpu.memory_space<vmem>>, %arg13: memref<32x32xf32, #tpu.memory_space<vmem>>, %arg14: memref<1x32xf32, #tpu.memory_space<vmem>>, %arg15: memref<32x2xf32, #tpu.memory_space<vmem>>, %arg16: memref<1x2xf32, #tpu.memory_space<vmem>>, %arg17: memref<1x10x2xf32, #tpu.memory_space<vmem>>) attributes {dimension_semantics = [#tpu.dimension_semantics<parallel>], iteration_bounds = array<i64: 2>, scalar_prefetch = 0 : i64, scratch_operands = 0 : i64, tpu.core_type = #tpu.core_type<tc>, window_params = [{transform_indices = @transform_0, window_bounds = array<i64: 1, 8, 3>}, {transform_indices = @transform_1, window_bounds = array<i64: 1, 10, 2>}, {transform_indices = @transform_2, window_bounds = array<i64: 1, 8, 1>}, {pipeline_mode = #tpu.pipeline_mode<synchronous>, transform_indices = @transform_3, window_bounds = array<i64: 3, 32>}, {pipeline_mode = #tpu.pipeline_mode<synchronous>, transform_indices = @transform_4, window_bounds = array<i64: 1, 32>}, {pipeline_mode = #tpu.pipeline_mode<synchronous>, transform_indices = @transform_5, window_bounds = array<i64: 32, 32>}, {pipeline_mode = #tpu.pipeline_mode<synchronous>, transform_indices = @transform_6, window_bounds = array<i64: 1, 32>}, {pipeline_mode = #tpu.pipeline_mode<synchronous>, transform_indices = @transform_7, window_bounds = array<i64: 32, 32>}, {pipeline_mode = #tpu.pipeline_mode<synchronous>, transform_indices = @transform_8, window_bounds = array<i64: 1, 32>}, {pipeline_mode = #tpu.pipeline_mode<synchronous>, transform_indices = @transform_9, window_bounds = array<i64: 32, 32>}, {pipeline_mode = #tpu.pipeline_mode<synchronous>, transform_indices = @transform_10, window_bounds = array<i64: 2, 32>}, {pipeline_mode = #tpu.pipeline_mode<synchronous>, transform_indices = @transform_11, window_bounds = array<i64: 1, 32>}, {pipeline_mode = #tpu.pipeline_mode<synchronous>, transform_indices = @transform_12, window_bounds = array<i64: 32, 32>}, {pipeline_mode = #tpu.pipeline_mode<synchronous>, transform_indices = @transform_13, window_bounds = array<i64: 1, 32>}, {pipeline_mode = #tpu.pipeline_mode<synchronous>, transform_indices = @transform_14, window_bounds = array<i64: 32, 2>}, {pipeline_mode = #tpu.pipeline_mode<synchronous>, transform_indices = @transform_15, window_bounds = array<i64: 1, 2>}, {transform_indices = @transform_16, window_bounds = array<i64: 1, 10, 2>}]} {
    %c0 = arith.constant 0 : index
    %c0_0 = arith.constant 0 : index
    %c0_1 = arith.constant 0 : index
    %0 = vector.load %arg1[%c0, %c0_0, %c0_1] : memref<1x8x3xf32, #tpu.memory_space<vmem>>, vector<1x8x3xf32>
    %1 = vector.shape_cast %0 : vector<1x8x3xf32> to vector<8x3xf32>
    %c0_2 = arith.constant 0 : index
    %c0_3 = arith.constant 0 : index
    %2 = vector.load %arg4[%c0_2, %c0_3] : memref<3x32xf32, #tpu.memory_space<vmem>>, vector<3x32xf32>
    %cst = arith.constant dense<0.000000e+00> : vector<8x32xf32>
    %3 = tpu.matmul %1, %2, %cst {dimension_numbers = #tpu.dot_dimension_numbers<[1], [0], [0], [1], [0, 0, 1, 1], [], []>} : vector<8x3xf32>, vector<3x32xf32>, vector<8x32xf32> -> vector<8x32xf32>
    %c0_4 = arith.constant 0 : index
    %c0_5 = arith.constant 0 : index
    %4 = vector.load %arg5[%c0_4, %c0_5] : memref<1x32xf32, #tpu.memory_space<vmem>>, vector<1x32xf32>
    %5 = vector.broadcast %4 : vector<1x32xf32> to vector<8x32xf32>
    %6 = arith.addf %3, %5 : vector<8x32xf32>
    %cst_6 = arith.constant 0.000000e+00 : f32
    %7 = vector.broadcast %cst_6 : f32 to vector<8x32xf32>
    %8 = arith.maximumf %6, %7 : vector<8x32xf32>
    %c0_7 = arith.constant 0 : index
    %c0_8 = arith.constant 0 : index
    %9 = vector.load %arg6[%c0_7, %c0_8] : memref<32x32xf32, #tpu.memory_space<vmem>>, vector<32x32xf32>
    %cst_9 = arith.constant dense<0.000000e+00> : vector<8x32xf32>
    %10 = tpu.matmul %8, %9, %cst_9 {dimension_numbers = #tpu.dot_dimension_numbers<[1], [0], [0], [1], [0, 0, 1, 1], [], []>} : vector<8x32xf32>, vector<32x32xf32>, vector<8x32xf32> -> vector<8x32xf32>
    %c0_10 = arith.constant 0 : index
    %c0_11 = arith.constant 0 : index
    %11 = vector.load %arg7[%c0_10, %c0_11] : memref<1x32xf32, #tpu.memory_space<vmem>>, vector<1x32xf32>
    %12 = vector.broadcast %11 : vector<1x32xf32> to vector<8x32xf32>
    %13 = arith.addf %10, %12 : vector<8x32xf32>
    %cst_12 = arith.constant 0.000000e+00 : f32
    %14 = vector.broadcast %cst_12 : f32 to vector<8x32xf32>
    %15 = arith.maximumf %13, %14 : vector<8x32xf32>
    %16 = vector.shape_cast %15 : vector<8x32xf32> to vector<1x8x32xf32>
    %c0_13 = arith.constant 0 : index
    %c0_14 = arith.constant 0 : index
    %c0_15 = arith.constant 0 : index
    %17 = vector.load %arg3[%c0_13, %c0_14, %c0_15] : memref<1x8x1xf32, #tpu.memory_space<vmem>>, vector<1x8x1xf32>
    %18 = vector.broadcast %17 : vector<1x8x1xf32> to vector<1x8x32xf32>
    %19 = arith.mulf %16, %18 : vector<1x8x32xf32>
    %cst_16 = arith.constant dense<0.000000e+00> : vector<1x32xf32>
    %20 = vector.multi_reduction <add>, %19, %cst_16 [1] : vector<1x8x32xf32> to vector<1x32xf32>
    %cst_17 = arith.constant dense<0.000000e+00> : vector<1x1xf32>
    %21 = vector.multi_reduction <add>, %17, %cst_17 [1] : vector<1x8x1xf32> to vector<1x1xf32>
    %22 = vector.broadcast %21 : vector<1x1xf32> to vector<1x32xf32>
    %23 = arith.divf %20, %22 : vector<1x32xf32>
    %c0_18 = arith.constant 0 : index
    %c0_19 = arith.constant 0 : index
    %24 = vector.load %arg8[%c0_18, %c0_19] : memref<32x32xf32, #tpu.memory_space<vmem>>, vector<32x32xf32>
    %cst_20 = arith.constant dense<0.000000e+00> : vector<1x32xf32>
    %25 = tpu.matmul %23, %24, %cst_20 {dimension_numbers = #tpu.dot_dimension_numbers<[1], [0], [0], [1], [0, 0, 1, 1], [], []>} : vector<1x32xf32>, vector<32x32xf32>, vector<1x32xf32> -> vector<1x32xf32>
    %c0_21 = arith.constant 0 : index
    %c0_22 = arith.constant 0 : index
    %26 = vector.load %arg9[%c0_21, %c0_22] : memref<1x32xf32, #tpu.memory_space<vmem>>, vector<1x32xf32>
    %27 = arith.addf %25, %26 : vector<1x32xf32>
    %c0_23 = arith.constant 0 : index
    %c0_24 = arith.constant 0 : index
    %28 = vector.load %arg10[%c0_23, %c0_24] : memref<32x32xf32, #tpu.memory_space<vmem>>, vector<32x32xf32>
    %cst_25 = arith.constant dense<0.000000e+00> : vector<1x32xf32>
    %29 = tpu.matmul %27, %28, %cst_25 {dimension_numbers = #tpu.dot_dimension_numbers<[1], [0], [0], [1], [0, 0, 1, 1], [], []>} : vector<1x32xf32>, vector<32x32xf32>, vector<1x32xf32> -> vector<1x32xf32>
    %c0_26 = arith.constant 0 : index
    %c0_27 = arith.constant 0 : index
    %30 = vector.load %arg12[%c0_26, %c0_27] : memref<1x32xf32, #tpu.memory_space<vmem>>, vector<1x32xf32>
    %31 = arith.addf %29, %30 : vector<1x32xf32>
    %c0_28 = arith.constant 0 : index
    %c0_29 = arith.constant 0 : index
    %c0_30 = arith.constant 0 : index
    %32 = vector.load %arg2[%c0_28, %c0_29, %c0_30] : memref<1x10x2xf32, #tpu.memory_space<vmem>>, vector<1x10x2xf32>
    %33 = vector.shape_cast %32 : vector<1x10x2xf32> to vector<10x2xf32>
    %c0_31 = arith.constant 0 : index
    %c0_32 = arith.constant 0 : index
    %34 = vector.load %arg11[%c0_31, %c0_32] : memref<2x32xf32, #tpu.memory_space<vmem>>, vector<2x32xf32>
    %cst_33 = arith.constant dense<0.000000e+00> : vector<10x32xf32>
    %35 = tpu.matmul %33, %34, %cst_33 {dimension_numbers = #tpu.dot_dimension_numbers<[1], [0], [0], [1], [0, 0, 1, 1], [], []>} : vector<10x2xf32>, vector<2x32xf32>, vector<10x32xf32> -> vector<10x32xf32>
    %36 = vector.shape_cast %35 : vector<10x32xf32> to vector<1x10x32xf32>
    %37 = vector.shape_cast %31 : vector<1x32xf32> to vector<1x1x32xf32>
    %38 = vector.broadcast %37 : vector<1x1x32xf32> to vector<1x10x32xf32>
    %39 = arith.addf %36, %38 : vector<1x10x32xf32>
    %cst_34 = arith.constant 0.000000e+00 : f32
    %40 = vector.broadcast %cst_34 : f32 to vector<1x10x32xf32>
    %41 = arith.maximumf %39, %40 : vector<1x10x32xf32>
    %42 = vector.shape_cast %41 : vector<1x10x32xf32> to vector<10x32xf32>
    %c0_35 = arith.constant 0 : index
    %c0_36 = arith.constant 0 : index
    %43 = vector.load %arg13[%c0_35, %c0_36] : memref<32x32xf32, #tpu.memory_space<vmem>>, vector<32x32xf32>
    %cst_37 = arith.constant dense<0.000000e+00> : vector<10x32xf32>
    %44 = tpu.matmul %42, %43, %cst_37 {dimension_numbers = #tpu.dot_dimension_numbers<[1], [0], [0], [1], [0, 0, 1, 1], [], []>} : vector<10x32xf32>, vector<32x32xf32>, vector<10x32xf32> -> vector<10x32xf32>
    %c0_38 = arith.constant 0 : index
    %c0_39 = arith.constant 0 : index
    %45 = vector.load %arg14[%c0_38, %c0_39] : memref<1x32xf32, #tpu.memory_space<vmem>>, vector<1x32xf32>
    %46 = vector.broadcast %45 : vector<1x32xf32> to vector<10x32xf32>
    %47 = arith.addf %44, %46 : vector<10x32xf32>
    %cst_40 = arith.constant 0.000000e+00 : f32
    %48 = vector.broadcast %cst_40 : f32 to vector<10x32xf32>
    %49 = arith.maximumf %47, %48 : vector<10x32xf32>
    %c0_41 = arith.constant 0 : index
    %c0_42 = arith.constant 0 : index
    %50 = vector.load %arg15[%c0_41, %c0_42] : memref<32x2xf32, #tpu.memory_space<vmem>>, vector<32x2xf32>
    %cst_43 = arith.constant dense<0.000000e+00> : vector<10x2xf32>
    %51 = tpu.matmul %49, %50, %cst_43 {dimension_numbers = #tpu.dot_dimension_numbers<[1], [0], [0], [1], [0, 0, 1, 1], [], []>} : vector<10x32xf32>, vector<32x2xf32>, vector<10x2xf32> -> vector<10x2xf32>
    %c0_44 = arith.constant 0 : index
    %c0_45 = arith.constant 0 : index
    %52 = vector.load %arg16[%c0_44, %c0_45] : memref<1x2xf32, #tpu.memory_space<vmem>>, vector<1x2xf32>
    %53 = vector.broadcast %52 : vector<1x2xf32> to vector<10x2xf32>
    %54 = arith.addf %51, %53 : vector<10x2xf32>
    %55 = tpu.iota {dimensions = array<i32: 1>} : vector<10x2xi32>
    %c1_i32 = arith.constant 1 : i32
    %56 = vector.broadcast %c1_i32 : i32 to vector<10x2xi32>
    %57 = arith.cmpi slt, %55, %56 : vector<10x2xi32>
    %cst_46 = arith.constant 0.000000e+00 : f32
    %58 = vector.broadcast %cst_46 : f32 to vector<10x2xf32>
    %59 = arith.maximumf %54, %58 : vector<10x2xf32>
    %60 = vector.broadcast %cst_46 : f32 to vector<10x2xf32>
    %61 = arith.subf %54, %60 : vector<10x2xf32>
    %62 = arith.cmpf one, %61, %61 : vector<10x2xf32>
    %63 = vector.broadcast %cst_46 : f32 to vector<10x2xf32>
    %64 = arith.addf %54, %63 : vector<10x2xf32>
    %65 = math.absf %61 : vector<10x2xf32>
    %cst_47 = arith.constant 0.000000e+00 : f32
    %66 = vector.broadcast %cst_47 : f32 to vector<10x2xf32>
    %67 = arith.subf %66, %65 : vector<10x2xf32>
    %68 = math.exp %67 : vector<10x2xf32>
    %69 = math.log1p %68 : vector<10x2xf32>
    %70 = arith.addf %59, %69 : vector<10x2xf32>
    %71 = arith.select %62, %64, %70 : vector<10x2xi1>, vector<10x2xf32>
    %cst_48 = arith.constant 1.000000e-01 : f32
    %72 = vector.broadcast %cst_48 : f32 to vector<10x2xf32>
    %73 = arith.addf %71, %72 : vector<10x2xf32>
    %74 = arith.select %57, %54, %73 : vector<10x2xi1>, vector<10x2xf32>
    %75 = vector.shape_cast %74 : vector<10x2xf32> to vector<1x10x2xf32>
    %c0_49 = arith.constant 0 : index
    %c0_50 = arith.constant 0 : index
    %c0_51 = arith.constant 0 : index
    %76 = vector.load %arg17[%c0_49, %c0_50, %c0_51] : memref<1x10x2xf32, #tpu.memory_space<vmem>>, vector<1x10x2xf32>
    tpu.vector_store %arg17[%c0_49, %c0_50, %c0_51], %75 {strides = array<i32>} : memref<1x10x2xf32, #tpu.memory_space<vmem>>, vector<1x10x2xf32>,
    return
  }
  func.func @transform_0(%arg0: i32) -> (i32, i32, i32) {
    %c0_i32 = arith.constant 0 : i32
    %c0_i32_0 = arith.constant 0 : i32
    %c0_i32_1 = arith.constant 0 : i32
    return %arg0, %c0_i32, %c0_i32_0 : i32, i32, i32
  }
  func.func @transform_1(%arg0: i32) -> (i32, i32, i32) {
    %c0_i32 = arith.constant 0 : i32
    %c0_i32_0 = arith.constant 0 : i32
    %c0_i32_1 = arith.constant 0 : i32
    return %arg0, %c0_i32, %c0_i32_0 : i32, i32, i32
  }
  func.func @transform_2(%arg0: i32) -> (i32, i32, i32) {
    %c0_i32 = arith.constant 0 : i32
    %c0_i32_0 = arith.constant 0 : i32
    %c0_i32_1 = arith.constant 0 : i32
    return %arg0, %c0_i32, %c0_i32_0 : i32, i32, i32
  }
  func.func @transform_3(%arg0: i32) -> (i32, i32) {
    %c0_i32 = arith.constant 0 : i32
    %c0_i32_0 = arith.constant 0 : i32
    %c0_i32_1 = arith.constant 0 : i32
    return %c0_i32, %c0_i32_0 : i32, i32
  }
  func.func @transform_4(%arg0: i32) -> (i32, i32) {
    %c0_i32 = arith.constant 0 : i32
    %c0_i32_0 = arith.constant 0 : i32
    %c0_i32_1 = arith.constant 0 : i32
    return %c0_i32, %c0_i32_0 : i32, i32
  }
  func.func @transform_5(%arg0: i32) -> (i32, i32) {
    %c0_i32 = arith.constant 0 : i32
    %c0_i32_0 = arith.constant 0 : i32
    %c0_i32_1 = arith.constant 0 : i32
    return %c0_i32, %c0_i32_0 : i32, i32
  }
  func.func @transform_6(%arg0: i32) -> (i32, i32) {
    %c0_i32 = arith.constant 0 : i32
    %c0_i32_0 = arith.constant 0 : i32
    %c0_i32_1 = arith.constant 0 : i32
    return %c0_i32, %c0_i32_0 : i32, i32
  }
  func.func @transform_7(%arg0: i32) -> (i32, i32) {
    %c0_i32 = arith.constant 0 : i32
    %c0_i32_0 = arith.constant 0 : i32
    %c0_i32_1 = arith.constant 0 : i32
    return %c0_i32, %c0_i32_0 : i32, i32
  }
  func.func @transform_8(%arg0: i32) -> (i32, i32) {
    %c0_i32 = arith.constant 0 : i32
    %c0_i32_0 = arith.constant 0 : i32
    %c0_i32_1 = arith.constant 0 : i32
    return %c0_i32, %c0_i32_0 : i32, i32
  }
  func.func @transform_9(%arg0: i32) -> (i32, i32) {
    %c0_i32 = arith.constant 0 : i32
    %c0_i32_0 = arith.constant 0 : i32
    %c0_i32_1 = arith.constant 0 : i32
    return %c0_i32, %c0_i32_0 : i32, i32
  }
  func.func @transform_10(%arg0: i32) -> (i32, i32) {
    %c0_i32 = arith.constant 0 : i32
    %c0_i32_0 = arith.constant 0 : i32
    %c0_i32_1 = arith.constant 0 : i32
    return %c0_i32, %c0_i32_0 : i32, i32
  }
  func.func @transform_11(%arg0: i32) -> (i32, i32) {
    %c0_i32 = arith.constant 0 : i32
    %c0_i32_0 = arith.constant 0 : i32
    %c0_i32_1 = arith.constant 0 : i32
    return %c0_i32, %c0_i32_0 : i32, i32
  }
  func.func @transform_12(%arg0: i32) -> (i32, i32) {
    %c0_i32 = arith.constant 0 : i32
    %c0_i32_0 = arith.constant 0 : i32
    %c0_i32_1 = arith.constant 0 : i32
    return %c0_i32, %c0_i32_0 : i32, i32
  }
  func.func @transform_13(%arg0: i32) -> (i32, i32) {
    %c0_i32 = arith.constant 0 : i32
    %c0_i32_0 = arith.constant 0 : i32
    %c0_i32_1 = arith.constant 0 : i32
    return %c0_i32, %c0_i32_0 : i32, i32
  }
  func.func @transform_14(%arg0: i32) -> (i32, i32) {
    %c0_i32 = arith.constant 0 : i32
    %c0_i32_0 = arith.constant 0 : i32
    %c0_i32_1 = arith.constant 0 : i32
    return %c0_i32, %c0_i32_0 : i32, i32
  }
  func.func @transform_15(%arg0: i32) -> (i32, i32) {
    %c0_i32 = arith.constant 0 : i32
    %c0_i32_0 = arith.constant 0 : i32
    %c0_i32_1 = arith.constant 0 : i32
    return %c0_i32, %c0_i32_0 : i32, i32
  }
  func.func @transform_16(%arg0: i32) -> (i32, i32, i32) {
    %c0_i32 = arith.constant 0 : i32
    %c0_i32_0 = arith.constant 0 : i32
    %c0_i32_1 = arith.constant 0 : i32
    return %arg0, %c0_i32, %c0_i32_0 : i32, i32, i32
  }
}

</mosaic_0001>

<llo_original>
// kernel: tpu_custom_call.1
$region0: #{tpu_custom_call.1}
  #allocation0 [shape = 'u32[]', space=smem, size = 0x4, offset = 0x4, fixed_abs, tag = 'smem constant byte address 0x4 - core index']
  #allocation1 [shape = 'u32[72,128]{1,0:T(1,128)}', space=vmem, size = 0x9000, scoped, tag = 'internal scratch']
  %s0 = inlined_call_operand.vmem [shape: f32[2,8,3], index: 0, kind: input, shape index: {}]
  %s1 = inlined_call_operand.vmem [shape: f32[2,10,2], index: 1, kind: input, shape index: {}]
  %s2 = inlined_call_operand.vmem [shape: f32[2,8,1], index: 2, kind: input, shape index: {}]
  %s3 = inlined_call_operand.vmem [shape: f32[3,32], index: 3, kind: input, shape index: {}]
  %s4 = inlined_call_operand.vmem [shape: f32[1,32], index: 4, kind: input, shape index: {}]
  %s5 = inlined_call_operand.vmem [shape: f32[32,32], index: 5, kind: input, shape index: {}]
  %s6 = inlined_call_operand.vmem [shape: f32[1,32], index: 6, kind: input, shape index: {}]
  %s7 = inlined_call_operand.vmem [shape: f32[32,32], index: 7, kind: input, shape index: {}]
  %s8 = inlined_call_operand.vmem [shape: f32[1,32], index: 8, kind: input, shape index: {}]
  %s9 = inlined_call_operand.vmem [shape: f32[32,32], index: 9, kind: input, shape index: {}]
  %s10 = inlined_call_operand.vmem [shape: f32[2,32], index: 10, kind: input, shape index: {}]
  %s11 = inlined_call_operand.vmem [shape: f32[1,32], index: 11, kind: input, shape index: {}]
  %s12 = inlined_call_operand.hbm [shape: f32[32,32], index: 12, kind: input, shape index: {}]
  %s13 = inlined_call_operand.vmem [shape: f32[1,32], index: 13, kind: input, shape index: {}]
  %s14 = inlined_call_operand.vmem [shape: f32[32,2], index: 14, kind: input, shape index: {}]
  %s15 = inlined_call_operand.vmem [shape: f32[1,2], index: 15, kind: input, shape index: {}]
  %s16 = inlined_call_operand.vmem [shape: f32[2,10,2], index: 16, kind: output, shape index: {}]
  %s17 = sld [smem:[#allocation0]]
  $region101: #{tpu_custom_call.1} parent=0
    _
  %s19 = ssub.s32 1, %s17
  %s20 = scalar_select 0, %s19, %s17
  $region1: #{tpu_custom_call.1} parent=0
    #allocation2 [shape = 'u8[16384]{0}', space=vmem, size = 0x4000, scoped, tag = 'input window, operand 12, single buffered']
    #allocation3 [shape = 's32[2]{0}', space=sflag, size = 0x8, scoped, tag = 'scoped memory for tpu_custom_call.1']
    %21 = vsyncpa [#allocation3], 0
    loop: start=0, step=1, limit=4
    $region2: #{tpu_custom_call.1} parent=1 // loop_pre_header
      _
    $region3: #{tpu_custom_call.1} parent=1 // loop_header
      %s23 = sphi 0, %s27
      %p24 = scmp.ge.s32.totalorder %s23, 4
      %s33 = sphi 0, %s35
      %s36 = sphi 0, %s33
      %s37 = sphi 0, %s36
      %s53 = sphi 0, %s37
      %s59 = sphi 0, %s61
      %s62 = sphi 0, %s59
      %s63 = sphi 0, %s62
      %s79 = sphi 0, %s63
      %s85 = sphi 0, %s87
      %s88 = sphi 0, %s85
      %s89 = sphi 0, %s88
      %s105 = sphi 0, %s89
      %s109 = sphi 0, %s109
      %s111 = sphi 0, %s109
      %s112 = sphi 0, %s111
      %s126 = sphi 0, %s112
      %s130 = sphi 0, %s130
      %s132 = sphi 0, %s130
      %s133 = sphi 0, %s132
      %s147 = sphi 0, %s133
      %s151 = sphi 0, %s151
      %s153 = sphi 0, %s151
      %s154 = sphi 0, %s153
      %s168 = sphi 0, %s154
      %s172 = sphi 0, %s172
      %s174 = sphi 0, %s172
      %s175 = sphi 0, %s174
      %s189 = sphi 0, %s175
      %s193 = sphi 0, %s193
      %s195 = sphi 0, %s193
      %s196 = sphi 0, %s195
      %s210 = sphi 0, %s196
      %s214 = sphi 0, %s214
      %s216 = sphi 0, %s214
      %s217 = sphi 0, %s216
      %s231 = sphi 0, %s217
      %s235 = sphi 0, %s235
      %s237 = sphi 0, %s235
      %s238 = sphi 0, %s237
      %s252 = sphi 0, %s238
      %s256 = sphi 0, %s256
      %s258 = sphi 0, %s256
      %s259 = sphi 0, %s258
      %s273 = sphi 0, %s259
      %s277 = sphi 0, %s277
      %s279 = sphi 0, %s277
      %s280 = sphi 0, %s279
      %s294 = sphi 0, %s280
      %s298 = sphi 0, %s298
      %s300 = sphi 0, %s298
      %s301 = sphi 0, %s300
      %s315 = sphi 0, %s301
      %s319 = sphi 0, %s319
      %s321 = sphi 0, %s319
      %s322 = sphi 0, %s321
      %s336 = sphi 0, %s322
      %s340 = sphi 0, %s340
      %s342 = sphi 0, %s340
      %s343 = sphi 0, %s342
      %s357 = sphi 0, %s343
      %s361 = sphi 0, %s361
      %s363 = sphi 0, %s361
      %s364 = sphi 0, %s363
      %s378 = sphi 0, %s364
      %s384 = sphi 0, %s386
      %s387 = sphi 0, %s384
      %s388 = sphi 0, %s387
      %s404 = sphi 0, %s388
    $region4: #{tpu_custom_call.1} parent=1 // loop_header_branch
      %26 = sbr.rel (%p24) target = $region8
    $region5: #{tpu_custom_call.1} parent=1 // loop_body
      %s28 = ssub.s32 %s23, 1
      %s29 = ssub.s32 %s23, 2
      %s30 = sadd.s32 %s23, 1
      %s31 = ssub.s32 %s23, %s30
      %p32 = scmp.eq.s32.totalorder %s31, 0
      %s34 = sadd.s32 %s33, 1
      %s35 = scalar_select %p32, %s33, %s34
      %p38 = pneg %p32
      %p39 = scmp.eq.s32.totalorder %s23, 1
      %p40 = por %p38, %p39
      %p41 = scmp.ne.s32.totalorder %s33, %s36
      %p42 = scmp.eq.s32.totalorder %s23, 0
      %p43 = por %p41, %p42
      %p44 = scmp.ne.s32.totalorder %s33, %s36
      %p45 = scmp.eq.s32.totalorder %s28, 1
      %p46 = por %p44, %p45
      %p47 = scmp.ne.s32.totalorder %s36, %s37
      %p48 = scmp.eq.s32.totalorder %s28, 0
      %p49 = por %p47, %p48
      %p50 = scmp.ne.s32.totalorder %s36, %s37
      %p51 = scmp.eq.s32.totalorder %s29, 1
      %p52 = por %p50, %p51
      %p54 = scmp.ne.s32.totalorder %s37, %s53
      %p55 = scmp.eq.s32.totalorder %s29, 0
      %p56 = por %p54, %p55
      %s57 = ssub.s32 %s23, %s30
      %p58 = scmp.eq.s32.totalorder %s57, 0
      %s60 = sadd.s32 %s59, 1
      %s61 = scalar_select %p58, %s59, %s60
      %p64 = pneg %p58
      %p65 = scmp.eq.s32.totalorder %s23, 1
      %p66 = por %p64, %p65
      %p67 = scmp.ne.s32.totalorder %s59, %s62
      %p68 = scmp.eq.s32.totalorder %s23, 0
      %p69 = por %p67, %p68
      %p70 = scmp.ne.s32.totalorder %s59, %s62
      %p71 = scmp.eq.s32.totalorder %s28, 1
      %p72 = por %p70, %p71
      %p73 = scmp.ne.s32.totalorder %s62, %s63
      %p74 = scmp.eq.s32.totalorder %s28, 0
      %p75 = por %p73, %p74
      %p76 = scmp.ne.s32.totalorder %s62, %s63
      %p77 = scmp.eq.s32.totalorder %s29, 1
      %p78 = por %p76, %p77
      %p80 = scmp.ne.s32.totalorder %s63, %s79
      %p81 = scmp.eq.s32.totalorder %s29, 0
      %p82 = por %p80, %p81
      %s83 = ssub.s32 %s23, %s30
      %p84 = scmp.eq.s32.totalorder %s83, 0
      %s86 = sadd.s32 %s85, 1
      %s87 = scalar_select %p84, %s85, %s86
      %p90 = pneg %p84
      %p91 = scmp.eq.s32.totalorder %s23, 1
      %p92 = por %p90, %p91
      %p93 = scmp.ne.s32.totalorder %s85, %s88
      %p94 = scmp.eq.s32.totalorder %s23, 0
      %p95 = por %p93, %p94
      %p96 = scmp.ne.s32.totalorder %s85, %s88
      %p97 = scmp.eq.s32.totalorder %s28, 1
      %p98 = por %p96, %p97
      %p99 = scmp.ne.s32.totalorder %s88, %s89
      %p100 = scmp.eq.s32.totalorder %s28, 0
      %p101 = por %p99, %p100
      %p102 = scmp.ne.s32.totalorder %s88, %s89
      %p103 = scmp.eq.s32.totalorder %s29, 1
      %p104 = por %p102, %p103
      %p106 = scmp.ne.s32.totalorder %s89, %s105
      %p107 = scmp.eq.s32.totalorder %s29, 0
      %p108 = por %p106, %p107
      %s110 = sadd.s32 %s109, 1
      %p113 = scmp.eq.s32.totalorder %s23, 1
      %p114 = scmp.ne.s32.totalorder %s109, %s111
      %p115 = scmp.eq.s32.totalorder %s23, 0
      %p116 = por %p114, %p115
      %p117 = scmp.ne.s32.totalorder %s109, %s111
      %p118 = scmp.eq.s32.totalorder %s28, 1
      %p119 = por %p117, %p118
      %p120 = scmp.ne.s32.totalorder %s111, %s112
      %p121 = scmp.eq.s32.totalorder %s28, 0
      %p122 = por %p120, %p121
      %p123 = scmp.ne.s32.totalorder %s111, %s112
      %p124 = scmp.eq.s32.totalorder %s29, 1
      %p125 = por %p123, %p124
      %p127 = scmp.ne.s32.totalorder %s112, %s126
      %p128 = scmp.eq.s32.totalorder %s29, 0
      %p129 = por %p127, %p128
      %s131 = sadd.s32 %s130, 1
      %p134 = scmp.eq.s32.totalorder %s23, 1
      %p135 = scmp.ne.s32.totalorder %s130, %s132
      %p136 = scmp.eq.s32.totalorder %s23, 0
      %p137 = por %p135, %p136
      %p138 = scmp.ne.s32.totalorder %s130, %s132
      %p139 = scmp.eq.s32.totalorder %s28, 1
      %p140 = por %p138, %p139
      %p141 = scmp.ne.s32.totalorder %s132, %s133
      %p142 = scmp.eq.s32.totalorder %s28, 0
      %p143 = por %p141, %p142
      %p144 = scmp.ne.s32.totalorder %s132, %s133
      %p145 = scmp.eq.s32.totalorder %s29, 1
      %p146 = por %p144, %p145
      %p148 = scmp.ne.s32.totalorder %s133, %s147
      %p149 = scmp.eq.s32.totalorder %s29, 0
      %p150 = por %p148, %p149
      %s152 = sadd.s32 %s151, 1
      %p155 = scmp.eq.s32.totalorder %s23, 1
      %p156 = scmp.ne.s32.totalorder %s151, %s153
      %p157 = scmp.eq.s32.totalorder %s23, 0
      %p158 = por %p156, %p157
      %p159 = scmp.ne.s32.totalorder %s151, %s153
      %p160 = scmp.eq.s32.totalorder %s28, 1
      %p161 = por %p159, %p160
      %p162 = scmp.ne.s32.totalorder %s153, %s154
      %p163 = scmp.eq.s32.totalorder %s28, 0
      %p164 = por %p162, %p163
      %p165 = scmp.ne.s32.totalorder %s153, %s154
      %p166 = scmp.eq.s32.totalorder %s29, 1
      %p167 = por %p165, %p166
      %p169 = scmp.ne.s32.totalorder %s154, %s168
      %p170 = scmp.eq.s32.totalorder %s29, 0
      %p171 = por %p169, %p170
      %s173 = sadd.s32 %s172, 1
      %p176 = scmp.eq.s32.totalorder %s23, 1
      %p177 = scmp.ne.s32.totalorder %s172, %s174
      %p178 = scmp.eq.s32.totalorder %s23, 0
      %p179 = por %p177, %p178
      %p180 = scmp.ne.s32.totalorder %s172, %s174
      %p181 = scmp.eq.s32.totalorder %s28, 1
      %p182 = por %p180, %p181
      %p183 = scmp.ne.s32.totalorder %s174, %s175
      %p184 = scmp.eq.s32.totalorder %s28, 0
      %p185 = por %p183, %p184
      %p186 = scmp.ne.s32.totalorder %s174, %s175
      %p187 = scmp.eq.s32.totalorder %s29, 1
      %p188 = por %p186, %p187
      %p190 = scmp.ne.s32.totalorder %s175, %s189
      %p191 = scmp.eq.s32.totalorder %s29, 0
      %p192 = por %p190, %p191
      %s194 = sadd.s32 %s193, 1
      %p197 = scmp.eq.s32.totalorder %s23, 1
      %p198 = scmp.ne.s32.totalorder %s193, %s195
      %p199 = scmp.eq.s32.totalorder %s23, 0
      %p200 = por %p198, %p199
      %p201 = scmp.ne.s32.totalorder %s193, %s195
      %p202 = scmp.eq.s32.totalorder %s28, 1
      %p203 = por %p201, %p202
      %p204 = scmp.ne.s32.totalorder %s195, %s196
      %p205 = scmp.eq.s32.totalorder %s28, 0
      %p206 = por %p204, %p205
      %p207 = scmp.ne.s32.totalorder %s195, %s196
      %p208 = scmp.eq.s32.totalorder %s29, 1
      %p209 = por %p207, %p208
      %p211 = scmp.ne.s32.totalorder %s196, %s210
      %p212 = scmp.eq.s32.totalorder %s29, 0
      %p213 = por %p211, %p212
      %s215 = sadd.s32 %s214, 1
      %p218 = scmp.eq.s32.totalorder %s23, 1
      %p219 = scmp.ne.s32.totalorder %s214, %s216
      %p220 = scmp.eq.s32.totalorder %s23, 0
      %p221 = por %p219, %p220
      %p222 = scmp.ne.s32.totalorder %s214, %s216
      %p223 = scmp.eq.s32.totalorder %s28, 1
      %p224 = por %p222, %p223
      %p225 = scmp.ne.s32.totalorder %s216, %s217
      %p226 = scmp.eq.s32.totalorder %s28, 0
      %p227 = por %p225, %p226
      %p228 = scmp.ne.s32.totalorder %s216, %s217
      %p229 = scmp.eq.s32.totalorder %s29, 1
      %p230 = por %p228, %p229
      %p232 = scmp.ne.s32.totalorder %s217, %s231
      %p233 = scmp.eq.s32.totalorder %s29, 0
      %p234 = por %p232, %p233
      %s236 = sadd.s32 %s235, 1
      %p239 = scmp.eq.s32.totalorder %s23, 1
      %p240 = scmp.ne.s32.totalorder %s235, %s237
      %p241 = scmp.eq.s32.totalorder %s23, 0
      %p242 = por %p240, %p241
      %p243 = scmp.ne.s32.totalorder %s235, %s237
      %p244 = scmp.eq.s32.totalorder %s28, 1
      %p245 = por %p243, %p244
      %p246 = scmp.ne.s32.totalorder %s237, %s238
      %p247 = scmp.eq.s32.totalorder %s28, 0
      %p248 = por %p246, %p247
      %p249 = scmp.ne.s32.totalorder %s237, %s238
      %p250 = scmp.eq.s32.totalorder %s29, 1
      %p251 = por %p249, %p250
      %p253 = scmp.ne.s32.totalorder %s238, %s252
      %p254 = scmp.eq.s32.totalorder %s29, 0
      %p255 = por %p253, %p254
      %s257 = sadd.s32 %s256, 1
      %p260 = scmp.eq.s32.totalorder %s23, 1
      %p261 = scmp.ne.s32.totalorder %s256, %s258
      %p262 = scmp.eq.s32.totalorder %s23, 0
      %p263 = por %p261, %p262
      %p264 = scmp.ne.s32.totalorder %s256, %s258
      %p265 = scmp.eq.s32.totalorder %s28, 1
      %p266 = por %p264, %p265
      %p267 = scmp.ne.s32.totalorder %s258, %s259
      %p268 = scmp.eq.s32.totalorder %s28, 0
      %p269 = por %p267, %p268
      %p270 = scmp.ne.s32.totalorder %s258, %s259
      %p271 = scmp.eq.s32.totalorder %s29, 1
      %p272 = por %p270, %p271
      %p274 = scmp.ne.s32.totalorder %s259, %s273
      %p275 = scmp.eq.s32.totalorder %s29, 0
      %p276 = por %p274, %p275
      %s278 = sadd.s32 %s277, 1
      %p281 = scmp.eq.s32.totalorder %s23, 1
      %p282 = scmp.ne.s32.totalorder %s277, %s279
      %p283 = scmp.eq.s32.totalorder %s23, 0
      %p284 = por %p282, %p283
      %p285 = scmp.ne.s32.totalorder %s277, %s279
      %p286 = scmp.eq.s32.totalorder %s28, 1
      %p287 = por %p285, %p286
      %p288 = scmp.ne.s32.totalorder %s279, %s280
      %p289 = scmp.eq.s32.totalorder %s28, 0
      %p290 = por %p288, %p289
      %p291 = scmp.ne.s32.totalorder %s279, %s280
      %p292 = scmp.eq.s32.totalorder %s29, 1
      %p293 = por %p291, %p292
      %p295 = scmp.ne.s32.totalorder %s280, %s294
      %p296 = scmp.eq.s32.totalorder %s29, 0
      %p297 = por %p295, %p296
      %s299 = sadd.s32 %s298, 1
      %p302 = scmp.eq.s32.totalorder %s23, 1
      %p303 = scmp.ne.s32.totalorder %s298, %s300
      %p304 = scmp.eq.s32.totalorder %s23, 0
      %p305 = por %p303, %p304
      %p306 = scmp.ne.s32.totalorder %s298, %s300
      %p307 = scmp.eq.s32.totalorder %s28, 1
      %p308 = por %p306, %p307
      %p309 = scmp.ne.s32.totalorder %s300, %s301
      %p310 = scmp.eq.s32.totalorder %s28, 0
      %p311 = por %p309, %p310
      %p312 = scmp.ne.s32.totalorder %s300, %s301
      %p313 = scmp.eq.s32.totalorder %s29, 1
      %p314 = por %p312, %p313
      %p316 = scmp.ne.s32.totalorder %s301, %s315
      %p317 = scmp.eq.s32.totalorder %s29, 0
      %p318 = por %p316, %p317
      %s320 = sadd.s32 %s319, 1
      %p323 = scmp.eq.s32.totalorder %s23, 1
      %p324 = scmp.ne.s32.totalorder %s319, %s321
      %p325 = scmp.eq.s32.totalorder %s23, 0
      %p326 = por %p324, %p325
      %p327 = scmp.ne.s32.totalorder %s319, %s321
      %p328 = scmp.eq.s32.totalorder %s28, 1
      %p329 = por %p327, %p328
      %p330 = scmp.ne.s32.totalorder %s321, %s322
      %p331 = scmp.eq.s32.totalorder %s28, 0
      %p332 = por %p330, %p331
      %p333 = scmp.ne.s32.totalorder %s321, %s322
      %p334 = scmp.eq.s32.totalorder %s29, 1
      %p335 = por %p333, %p334
      %p337 = scmp.ne.s32.totalorder %s322, %s336
      %p338 = scmp.eq.s32.totalorder %s29, 0
      %p339 = por %p337, %p338
      %s341 = sadd.s32 %s340, 1
      %p344 = scmp.eq.s32.totalorder %s23, 1
      %p345 = scmp.ne.s32.totalorder %s340, %s342
      %p346 = scmp.eq.s32.totalorder %s23, 0
      %p347 = por %p345, %p346
      %p348 = scmp.ne.s32.totalorder %s340, %s342
      %p349 = scmp.eq.s32.totalorder %s28, 1
      %p350 = por %p348, %p349
      %p351 = scmp.ne.s32.totalorder %s342, %s343
      %p352 = scmp.eq.s32.totalorder %s28, 0
      %p353 = por %p351, %p352
      %p354 = scmp.ne.s32.totalorder %s342, %s343
      %p355 = scmp.eq.s32.totalorder %s29, 1
      %p356 = por %p354, %p355
      %p358 = scmp.ne.s32.totalorder %s343, %s357
      %p359 = scmp.eq.s32.totalorder %s29, 0
      %p360 = por %p358, %p359
      %s362 = sadd.s32 %s361, 1
      %p365 = scmp.eq.s32.totalorder %s23, 1
      %p366 = scmp.ne.s32.totalorder %s361, %s363
      %p367 = scmp.eq.s32.totalorder %s23, 0
      %p368 = por %p366, %p367
      %p369 = scmp.ne.s32.totalorder %s361, %s363
      %p370 = scmp.eq.s32.totalorder %s28, 1
      %p371 = por %p369, %p370
      %p372 = scmp.ne.s32.totalorder %s363, %s364
      %p373 = scmp.eq.s32.totalorder %s28, 0
      %p374 = por %p372, %p373
      %p375 = scmp.ne.s32.totalorder %s363, %s364
      %p376 = scmp.eq.s32.totalorder %s29, 1
      %p377 = por %p375, %p376
      %p379 = scmp.ne.s32.totalorder %s364, %s378
      %p380 = scmp.eq.s32.totalorder %s29, 0
      %p381 = por %p379, %p380
      %s382 = ssub.s32 %s23, %s30
      %p383 = scmp.eq.s32.totalorder %s382, 0
      %s385 = sadd.s32 %s384, 1
      %s386 = scalar_select %p383, %s384, %s385
      %p389 = pneg %p383
      %p390 = scmp.eq.s32.totalorder %s23, 1
      %p391 = por %p389, %p390
      %p392 = scmp.ne.s32.totalorder %s384, %s387
      %p393 = scmp.eq.s32.totalorder %s23, 0
      %p394 = por %p392, %p393
      %p395 = scmp.ne.s32.totalorder %s384, %s387
      %p396 = scmp.eq.s32.totalorder %s28, 1
      %p397 = por %p395, %p396
      %p398 = scmp.ne.s32.totalorder %s387, %s388
      %p399 = scmp.eq.s32.totalorder %s28, 0
      %p400 = por %p398, %p399
      %p401 = scmp.ne.s32.totalorder %s387, %s388
      %p402 = scmp.eq.s32.totalorder %s29, 1
      %p403 = por %p401, %p402
      %p405 = scmp.ne.s32.totalorder %s388, %s404
      %p406 = scmp.eq.s32.totalorder %s29, 0
      %p407 = por %p405, %p406
      %p408 = scmp.le.s32.totalorder 1, %s23
      %p409 = scmp.lt.s32.totalorder %s23, 3
      %p410 = pnand %p408, %p409
      %p411 = pneg %p410
      // Predicated region
      $region9: #{tpu_custom_call.1} parent=5 // pred_check
        _
      $region10: #{tpu_custom_call.1} parent=5 // pred_check_branch
        %413 = sbr.rel (%p410) target = $region12
      $region11: #{tpu_custom_call.1} parent=5 // pred_region
        %s414 = ssub.s32 %s23, 1
        // Predicated region
        $region13: #{tpu_custom_call.1} parent=11 // pred_check
          %p415 = pneg %p122
        $region14: #{tpu_custom_call.1} parent=11 // pred_check_branch
          %417 = sbr.rel (%p415) target = $region16
        $region15: #{tpu_custom_call.1} parent=11 // pred_region
          _
        $region16: #{tpu_custom_call.1} parent=11 // pred_fallthru
          _
        // Predicated region
        $region17: #{tpu_custom_call.1} parent=11 // pred_check
          %p418 = pneg %p143
        $region18: #{tpu_custom_call.1} parent=11 // pred_check_branch
          %420 = sbr.rel (%p418) target = $region20
        $region19: #{tpu_custom_call.1} parent=11 // pred_region
          _
        $region20: #{tpu_custom_call.1} parent=11 // pred_fallthru
          _
        // Predicated region
        $region21: #{tpu_custom_call.1} parent=11 // pred_check
          %p421 = pneg %p164
        $region22: #{tpu_custom_call.1} parent=11 // pred_check_branch
          %423 = sbr.rel (%p421) target = $region24
        $region23: #{tpu_custom_call.1} parent=11 // pred_region
          _
        $region24: #{tpu_custom_call.1} parent=11 // pred_fallthru
          _
        // Predicated region
        $region25: #{tpu_custom_call.1} parent=11 // pred_check
          %p424 = pneg %p185
        $region26: #{tpu_custom_call.1} parent=11 // pred_check_branch
          %426 = sbr.rel (%p424) target = $region28
        $region27: #{tpu_custom_call.1} parent=11 // pred_region
          _
        $region28: #{tpu_custom_call.1} parent=11 // pred_fallthru
          _
        // Predicated region
        $region29: #{tpu_custom_call.1} parent=11 // pred_check
          %p427 = pneg %p206
        $region30: #{tpu_custom_call.1} parent=11 // pred_check_branch
          %429 = sbr.rel (%p427) target = $region32
        $region31: #{tpu_custom_call.1} parent=11 // pred_region
          _
        $region32: #{tpu_custom_call.1} parent=11 // pred_fallthru
          _
        // Predicated region
        $region33: #{tpu_custom_call.1} parent=11 // pred_check
          %p430 = pneg %p227
        $region34: #{tpu_custom_call.1} parent=11 // pred_check_branch
          %432 = sbr.rel (%p430) target = $region36
        $region35: #{tpu_custom_call.1} parent=11 // pred_region
          _
        $region36: #{tpu_custom_call.1} parent=11 // pred_fallthru
          _
        // Predicated region
        $region37: #{tpu_custom_call.1} parent=11 // pred_check
          %p433 = pneg %p248
        $region38: #{tpu_custom_call.1} parent=11 // pred_check_branch
          %435 = sbr.rel (%p433) target = $region40
        $region39: #{tpu_custom_call.1} parent=11 // pred_region
          _
        $region40: #{tpu_custom_call.1} parent=11 // pred_fallthru
          _
        // Predicated region
        $region41: #{tpu_custom_call.1} parent=11 // pred_check
          %p436 = pneg %p269
        $region42: #{tpu_custom_call.1} parent=11 // pred_check_branch
          %438 = sbr.rel (%p436) target = $region44
        $region43: #{tpu_custom_call.1} parent=11 // pred_region
          _
        $region44: #{tpu_custom_call.1} parent=11 // pred_fallthru
          _
        // Predicated region
        $region45: #{tpu_custom_call.1} parent=11 // pred_check
          %p439 = pneg %p290
        $region46: #{tpu_custom_call.1} parent=11 // pred_check_branch
          %441 = sbr.rel (%p439) target = $region48
        $region47: #{tpu_custom_call.1} parent=11 // pred_region
          _
        $region48: #{tpu_custom_call.1} parent=11 // pred_fallthru
          _
        // Predicated region
        $region49: #{tpu_custom_call.1} parent=11 // pred_check
          %p442 = pneg %p311
        $region50: #{tpu_custom_call.1} parent=11 // pred_check_branch
          %444 = sbr.rel (%p442) target = $region52
        $region51: #{tpu_custom_call.1} parent=11 // pred_region
          %446 = vsyncadd [#allocation3], 0
          %s447 = sshll.u32 %s12, 4
          %s448 = int_to_ptr.hbm [resolvable:$true] %s447
          %s449 = sshll.u32 [#allocation2], 4
          %s450 = int_to_ptr.vmem [resolvable:$true] %s449
          %455 = dma.hbm_to_vmem [thread:$0]  %s448, 512, %s450, [#allocation3], 128, 128, 8
        $region52: #{tpu_custom_call.1} parent=11 // pred_fallthru
          _
        // Predicated region
        $region53: #{tpu_custom_call.1} parent=11 // pred_check
          %p456 = pneg %p332
        $region54: #{tpu_custom_call.1} parent=11 // pred_check_branch
          %458 = sbr.rel (%p456) target = $region56
        $region55: #{tpu_custom_call.1} parent=11 // pred_region
          _
        $region56: #{tpu_custom_call.1} parent=11 // pred_fallthru
          _
        // Predicated region
        $region57: #{tpu_custom_call.1} parent=11 // pred_check
          %p459 = pneg %p353
        $region58: #{tpu_custom_call.1} parent=11 // pred_check_branch
          %461 = sbr.rel (%p459) target = $region60
        $region59: #{tpu_custom_call.1} parent=11 // pred_region
          _
        $region60: #{tpu_custom_call.1} parent=11 // pred_fallthru
          _
        // Predicated region
        $region61: #{tpu_custom_call.1} parent=11 // pred_check
          %p462 = pneg %p374
        $region62: #{tpu_custom_call.1} parent=11 // pred_check_branch
          %464 = sbr.rel (%p462) target = $region64
        $region63: #{tpu_custom_call.1} parent=11 // pred_region
          _
        $region64: #{tpu_custom_call.1} parent=11 // pred_fallthru
          _
      $region12: #{tpu_custom_call.1} parent=5 // pred_fallthru
        _
      %p465 = scmp.lt.s32.totalorder %s23, 2
      // Predicated region
      $region65: #{tpu_custom_call.1} parent=5 // pred_check
        %p466 = pneg %p465
      $region66: #{tpu_custom_call.1} parent=5 // pred_check_branch
        %468 = sbr.rel (%p466) target = $region68
      $region67: #{tpu_custom_call.1} parent=5 // pred_region
        // Predicated region
        $region69: #{tpu_custom_call.1} parent=67 // pred_check
          %p469 = pneg %p43
        $region70: #{tpu_custom_call.1} parent=67 // pred_check_branch
          %471 = sbr.rel (%p469) target = $region72
        $region71: #{tpu_custom_call.1} parent=67 // pred_region
          %p472 = scmp.lt.s32.totalorder %s23, 1
          %s473 = scalar_select %p472, %s23, 1
          %s474 = smul.addr %s473, 8
          %s475 = scalar_lea.vmem %s0, %s474
        $region72: #{tpu_custom_call.1} parent=67 // pred_fallthru
          _
        // Predicated region
        $region73: #{tpu_custom_call.1} parent=67 // pred_check
          %p476 = pneg %p69
        $region74: #{tpu_custom_call.1} parent=67 // pred_check_branch
          %478 = sbr.rel (%p476) target = $region76
        $region75: #{tpu_custom_call.1} parent=67 // pred_region
          %p479 = scmp.lt.s32.totalorder %s23, 1
          %s480 = scalar_select %p479, %s23, 1
          %s481 = smul.addr %s480, 2
          %s482 = smul.addr %s481, 8
          %s483 = scalar_lea.vmem %s1, %s482
        $region76: #{tpu_custom_call.1} parent=67 // pred_fallthru
          _
        // Predicated region
        $region77: #{tpu_custom_call.1} parent=67 // pred_check
          %p484 = pneg %p95
        $region78: #{tpu_custom_call.1} parent=67 // pred_check_branch
          %486 = sbr.rel (%p484) target = $region80
        $region79: #{tpu_custom_call.1} parent=67 // pred_region
          %p487 = scmp.lt.s32.totalorder %s23, 1
          %s488 = scalar_select %p487, %s23, 1
          %s489 = smul.addr %s488, 8
          %s490 = scalar_lea.vmem %s2, %s489
        $region80: #{tpu_custom_call.1} parent=67 // pred_fallthru
          _
      $region68: #{tpu_custom_call.1} parent=5 // pred_fallthru
        _
      %p491 = scmp.le.s32.totalorder 1, %s23
      %p492 = scmp.lt.s32.totalorder %s23, 3
      %p493 = pnand %p491, %p492
      %p494 = pneg %p493
      // Predicated region
      $region81: #{tpu_custom_call.1} parent=5 // pred_check
        _
      $region82: #{tpu_custom_call.1} parent=5 // pred_check_branch
        %496 = sbr.rel (%p493) target = $region84
      $region83: #{tpu_custom_call.1} parent=5 // pred_region
        %s497 = ssub.s32 %s23, 1
        // Predicated region
        $region85: #{tpu_custom_call.1} parent=83 // pred_check
          %p498 = pneg %p311
        $region86: #{tpu_custom_call.1} parent=83 // pred_check_branch
          %500 = sbr.rel (%p498) target = $region88
        $region87: #{tpu_custom_call.1} parent=83 // pred_region
          %502 = dma.done [#allocation3], 512
        $region88: #{tpu_custom_call.1} parent=83 // pred_fallthru
          _
        %p503 = scmp.lt.s32.totalorder %s28, 1
        %s504 = scalar_select %p503, %s28, 1
        %s505 = smul.addr %s504, 8
        %s506 = scalar_lea.vmem %s0, %s505
        %p507 = pneg %p49
        %p508 = pneg %p46
        %p509 = scmp.lt.s32.totalorder %s28, 1
        %s510 = scalar_select %p509, %s28, 1
        %s511 = smul.addr %s510, 2
        %s512 = smul.addr %s511, 8
        %s513 = scalar_lea.vmem %s1, %s512
        %p514 = pneg %p75
        %p515 = pneg %p72
        %p516 = scmp.lt.s32.totalorder %s28, 1
        %s517 = scalar_select %p516, %s28, 1
        %s518 = smul.addr %s517, 8
        %s519 = scalar_lea.vmem %s2, %s518
        %p520 = pneg %p101
        %p521 = pneg %p98
        %p522 = pneg %p122
        %p523 = pneg %p119
        %p524 = pneg %p143
        %p525 = pneg %p140
        %p526 = pneg %p164
        %p527 = pneg %p161
        %p528 = pneg %p185
        %p529 = pneg %p182
        %p530 = pneg %p206
        %p531 = pneg %p203
        %p532 = pneg %p227
        %p533 = pneg %p224
        %p534 = pneg %p248
        %p535 = pneg %p245
        %p536 = pneg %p269
        %p537 = pneg %p266
        %p538 = pneg %p290
        %p539 = pneg %p287
        %p540 = pneg %p311
        %p541 = pneg %p308
        %p542 = pneg %p332
        %p543 = pneg %p329
        %p544 = pneg %p353
        %p545 = pneg %p350
        %p546 = pneg %p374
        %p547 = pneg %p371
        %p548 = pneg %p400
        %p549 = pneg %p397
        %p550 = scmp.lt.s32.totalorder %s28, 1
        %s551 = scalar_select %p550, %s28, 1
        %s552 = smul.addr %s551, 2
        %s553 = smul.addr %s552, 8
        %s554 = scalar_lea.vmem %s16, %s553
        %p555 = scmp.lt.s32.totalorder %s28, 1
        %s556 = scalar_select %p555, %s28, 1
        %s557 = smul.addr %s556, 8
        %s558 = scalar_lea.vmem %s0, %s557
        %p559 = scmp.lt.s32.totalorder %s28, 1
        %s560 = scalar_select %p559, %s28, 1
        %s561 = smul.addr %s560, 2
        %s562 = smul.addr %s561, 8
        %s563 = scalar_lea.vmem %s1, %s562
        %p564 = scmp.lt.s32.totalorder %s28, 1
        %s565 = scalar_select %p564, %s28, 1
        %s566 = smul.addr %s565, 8
        %s567 = scalar_lea.vmem %s2, %s566
        %p568 = scmp.lt.s32.totalorder %s28, 1
        %s569 = scalar_select %p568, %s28, 1
        %s570 = smul.addr %s569, 2
        %s571 = smul.addr %s570, 8
        %s572 = scalar_lea.vmem %s16, %s571
        %v573 = vld [vmem:[%s558] sm:$0xff]
        %v574 = vld [vmem:[%s3] sm:$0x7]
        %v575 = vld [vmem:[%s4] sm:$0x1]
        %v577 = vperm.slane %v575, 0
        %vm579 = vcmask 23552
        %v581 = vsel %vm579, %v573, 0
        %vm583 = vcmask 1042432
        %v585 = vsel %vm583, %v574, 0
        %587 = vmatpush.msra.mxu0 0.0
        %588 = vmatpush.msra.mxu0 0.0
        %589 = vmatpush.msra.mxu0 0.0
        %590 = vmatpush.msra.mxu0 0.0
        %591 = vmatpush.msra.mxu0 0.0
        %592 = vmatpush.msra.mxu0 0.0
        %593 = vmatpush.msra.mxu0 0.0
        %594 = vmatpush.msra.mxu0 0.0
        %595 = vmatpush.msra.mxu0 0.0
        %596 = vmatpush.msra.mxu0 0.0
        %597 = vmatpush.msra.mxu0 0.0
        %598 = vmatpush.msra.mxu0 0.0
        %599 = vmatpush.msra.mxu0 0.0
        %600 = vmatpush.msra.mxu0 0.0
        %601 = vmatpush.msra.mxu0 0.0
        %602 = vmatpush.msra.mxu0 %v585
        %603 = vmatmul.f32.gmra.mxu0 %v581
        %v604 = vpop.f32.mrf.mxu0
        %v605 = vadd.f32 %v577, %v604
        %606 = vdwg.mxu0
        %v607 = vmax.f32 %v605, 0.0
        %v608 = vld [vmem:[%s5] sm:$0xff]
        %v609 = vld [vmem:[%s5 + $0x8] sm:$0xff]
        %v610 = vld [vmem:[%s5 + $0x10] sm:$0xff]
        %v611 = vld [vmem:[%s5 + $0x18] sm:$0xff]
        %v612 = vld [vmem:[%s6] sm:$0x1]
        %v614 = vperm.slane %v612, 0
        %vm616 = vcmask 261120
        %v618 = vsel %vm616, %v607, 0
        %620 = vmatpush.msra.mxu0 0.0
        %621 = vmatpush.msra.mxu0 0.0
        %622 = vmatpush.msra.mxu0 0.0
        %623 = vmatpush.msra.mxu0 0.0
        %624 = vmatpush.msra.mxu0 0.0
        %625 = vmatpush.msra.mxu0 0.0
        %626 = vmatpush.msra.mxu0 0.0
        %627 = vmatpush.msra.mxu0 0.0
        %628 = vmatpush.msra.mxu0 0.0
        %629 = vmatpush.msra.mxu0 0.0
        %630 = vmatpush.msra.mxu0 0.0
        %631 = vmatpush.msra.mxu0 0.0
        %632 = vmatpush.msra.mxu0 %v611
        %633 = vmatpush.msra.mxu0 %v610
        %634 = vmatpush.msra.mxu0 %v609
        %635 = vmatpush.msra.mxu0 %v608
        %636 = vmatmul.f32.gmra.mxu0 %v618
        %v637 = vpop.f32.mrf.mxu0
        %v638 = vadd.f32 %v614, %v637
        %639 = vdwg.mxu0
        %v640 = vmax.f32 %v638, 0.0
        %v641 = vld [vmem:[%s567] sm:$0xff]
        %643 = vset.pattern.permute.xlu0 0
        %644 = vperm.xlu0 %643, %v641
        %v645 = vpop.permute.xlu0 %644
        %v647 = vmul.f32 %v640, %v645
        %v648 = vsel %vm616, %v647, 0.0
        %v649 = vrot.slane %v648, 4
        %v650 = vadd.f32 %v648, %v649
        %v651 = vrot.slane %v650, 2
        %v652 = vadd.f32 %v650, %v651
        %v653 = vrot.slane %v652, 1
        %v654 = vadd.f32 %v652, %v653
        %vm655 = vcmask 7168
        %v656 = vsel %vm655, %v641, 0.0
        %v657 = vrot.slane %v656, 4
        %v658 = vadd.f32 %v656, %v657
        %v659 = vrot.slane %v658, 2
        %v660 = vadd.f32 %v658, %v659
        %v661 = vrot.slane %v660, 1
        %v662 = vadd.f32 %v660, %v661
        %664 = vset.pattern.permute.xlu0 0
        %665 = vperm.xlu0 %664, %v662
        %v666 = vpop.permute.xlu0 %665
        %v668 = vrcp.pop %v666
        %v669 = vmul.f32 %v666, %v668
        %v670 = vsub.f32 1.0, %v669
        %v671 = vmul.f32 %v668, %v670
        %v672 = vadd.f32 %v668, %v671
        %vm673 = vweird.f32 %v666
        %vm674 = vweird.f32 %v668
        %vm675 = vmor %vm673, %vm674
        %v676 = vsel %vm675, %v668, %v672
        %v677 = vand.u32 2147483647, %v666
        %vm678 = vcmp.eq.f32.partialorder %v677, 8.507059e+37
        %v679 = vand.u32 %v666, 2147483648
        %v680 = vor.u32 1.1754944e-38, %v679
        %v681 = vsel %vm678, %v680, %v676
        %v682 = vmul.f32 %v654, %v681
        %v683 = vld [vmem:[%s7] sm:$0xff]
        %v684 = vld [vmem:[%s7 + $0x8] sm:$0xff]
        %v685 = vld [vmem:[%s7 + $0x10] sm:$0xff]
        %v686 = vld [vmem:[%s7 + $0x18] sm:$0xff]
        %v687 = vld [vmem:[%s8] sm:$0x1]
        %v689 = vsel %vm616, %v682, 0
        %691 = vmatpush.msra.mxu0 0.0
        %692 = vmatpush.msra.mxu0 0.0
        %693 = vmatpush.msra.mxu0 0.0
        %694 = vmatpush.msra.mxu0 0.0
        %695 = vmatpush.msra.mxu0 0.0
        %696 = vmatpush.msra.mxu0 0.0
        %697 = vmatpush.msra.mxu0 0.0
        %698 = vmatpush.msra.mxu0 0.0
        %699 = vmatpush.msra.mxu0 0.0
        %700 = vmatpush.msra.mxu0 0.0
        %701 = vmatpush.msra.mxu0 0.0
        %702 = vmatpush.msra.mxu0 0.0
        %703 = vmatpush.msra.mxu0 %v686
        %704 = vmatpush.msra.mxu0 %v685
        %705 = vmatpush.msra.mxu0 %v684
        %706 = vmatpush.msra.mxu0 %v683
        %707 = vmatmul.f32.gmra.mxu0 %v689
        %v708 = vpop.f32.mrf.mxu0
        %v709 = vadd.f32 %v687, %v708
        %710 = vdwg.mxu0
        %v711 = vld [vmem:[%s9] sm:$0xff]
        %v712 = vld [vmem:[%s9 + $0x8] sm:$0xff]
        %v713 = vld [vmem:[%s9 + $0x10] sm:$0xff]
        %v714 = vld [vmem:[%s9 + $0x18] sm:$0xff]
        %v715 = vld [vmem:[%s11] sm:$0x1]
        %v717 = vsel %vm616, %v709, 0
        %719 = vmatpush.msra.mxu0 0.0
        %720 = vmatpush.msra.mxu0 0.0
        %721 = vmatpush.msra.mxu0 0.0
        %722 = vmatpush.msra.mxu0 0.0
        %723 = vmatpush.msra.mxu0 0.0
        %724 = vmatpush.msra.mxu0 0.0
        %725 = vmatpush.msra.mxu0 0.0
        %726 = vmatpush.msra.mxu0 0.0
        %727 = vmatpush.msra.mxu0 0.0
        %728 = vmatpush.msra.mxu0 0.0
        %729 = vmatpush.msra.mxu0 0.0
        %730 = vmatpush.msra.mxu0 0.0
        %731 = vmatpush.msra.mxu0 %v714
        %732 = vmatpush.msra.mxu0 %v713
        %733 = vmatpush.msra.mxu0 %v712
        %734 = vmatpush.msra.mxu0 %v711
        %735 = vmatmul.f32.gmra.mxu0 %v717
        %v736 = vpop.f32.mrf.mxu0
        %v737 = vadd.f32 %v715, %v736
        %738 = vdwg.mxu0
        %v739 = vld [vmem:[%s563] sm:$0xff]
        %v740 = vld [vmem:[%s563 + $0x8] sm:$0x3]
        %v741 = vld [vmem:[%s10] sm:$0x3]
        %vm742 = vcmask 15360
        %v744 = vsel %vm742, %v739, 0
        %v747 = vsel %vm742, %v740, 0
        %vm749 = vcmask 1041408
        %v751 = vsel %vm749, %v741, 0
        %753 = vmatpush.msra.mxu0 0.0
        %754 = vmatpush.msra.mxu0 0.0
        %755 = vmatpush.msra.mxu0 0.0
        %756 = vmatpush.msra.mxu0 0.0
        %757 = vmatpush.msra.mxu0 0.0
        %758 = vmatpush.msra.mxu0 0.0
        %759 = vmatpush.msra.mxu0 0.0
        %760 = vmatpush.msra.mxu0 0.0
        %761 = vmatpush.msra.mxu0 0.0
        %762 = vmatpush.msra.mxu0 0.0
        %763 = vmatpush.msra.mxu0 0.0
        %764 = vmatpush.msra.mxu0 0.0
        %765 = vmatpush.msra.mxu0 0.0
        %766 = vmatpush.msra.mxu0 0.0
        %767 = vmatpush.msra.mxu0 0.0
        %768 = vmatpush.msra.mxu0 %v751
        %769 = vmatmul.f32.gmra.mxu0 %v744
        %v770 = vpop.f32.mrf.mxu0
        %v771 = vadd.f32 0.0, %v770
        %772 = vmatmul.f32.gmra.mxu0 %v747
        %v773 = vpop.f32.mrf.mxu0
        %v774 = vadd.f32 0.0, %v773
        %775 = vdwg.mxu0
        %v776 = vperm.slane %v737, 0
        %v777 = vadd.f32 %v771, %v776
        %v778 = vadd.f32 %v774, %v776
        %v779 = vmax.f32 %v777, 0.0
        %v780 = vmax.f32 %v778, 0.0
        %v781 = vld [vmem:[#allocation2] sm:$0xff]
        %v782 = vld [vmem:[#allocation2 + $0x8] sm:$0xff]
        %v783 = vld [vmem:[#allocation2 + $0x10] sm:$0xff]
        %v784 = vld [vmem:[#allocation2 + $0x18] sm:$0xff]
        %v785 = vld [vmem:[%s13] sm:$0x1]
        %v787 = vperm.slane %v785, 0
        %v790 = vsel %vm616, %v779, 0
        %v793 = vsel %vm616, %v780, 0
        %795 = vmatpush.msra.mxu0 0.0
        %796 = vmatpush.msra.mxu0 0.0
        %797 = vmatpush.msra.mxu0 0.0
        %798 = vmatpush.msra.mxu0 0.0
        %799 = vmatpush.msra.mxu0 0.0
        %800 = vmatpush.msra.mxu0 0.0
        %801 = vmatpush.msra.mxu0 0.0
        %802 = vmatpush.msra.mxu0 0.0
        %803 = vmatpush.msra.mxu0 0.0
        %804 = vmatpush.msra.mxu0 0.0
        %805 = vmatpush.msra.mxu0 0.0
        %806 = vmatpush.msra.mxu0 0.0
        %807 = vmatpush.msra.mxu0 %v784
        %808 = vmatpush.msra.mxu0 %v783
        %809 = vmatpush.msra.mxu0 %v782
        %810 = vmatpush.msra.mxu0 %v781
        %811 = vmatmul.f32.gmra.mxu0 %v790
        %v812 = vpop.f32.mrf.mxu0
        %v813 = vadd.f32 %v787, %v812
        %814 = vmatmul.f32.gmra.mxu0 %v793
        %v815 = vpop.f32.mrf.mxu0
        %v816 = vadd.f32 %v787, %v815
        %817 = vdwg.mxu0
        %v818 = vmax.f32 %v813, 0.0
        %v819 = vmax.f32 %v816, 0.0
        %v820 = vld [vmem:[%s14] sm:$0xff]
        %v821 = vld [vmem:[%s14 + $0x8] sm:$0xff]
        %v822 = vld [vmem:[%s14 + $0x10] sm:$0xff]
        %v823 = vld [vmem:[%s14 + $0x18] sm:$0xff]
        %v824 = vld [vmem:[%s15] sm:$0x1]
        %v826 = vperm.slane %v824, 0
        %v829 = vsel %vm616, %v818, 0
        %v832 = vsel %vm616, %v819, 0
        %834 = vmatpush.msra.mxu0 0.0
        %835 = vmatpush.msra.mxu0 0.0
        %836 = vmatpush.msra.mxu0 0.0
        %837 = vmatpush.msra.mxu0 0.0
        %838 = vmatpush.msra.mxu0 0.0
        %839 = vmatpush.msra.mxu0 0.0
        %840 = vmatpush.msra.mxu0 0.0
        %841 = vmatpush.msra.mxu0 0.0
        %842 = vmatpush.msra.mxu0 0.0
        %843 = vmatpush.msra.mxu0 0.0
        %844 = vmatpush.msra.mxu0 0.0
        %845 = vmatpush.msra.mxu0 0.0
        %846 = vmatpush.msra.mxu0 %v823
        %847 = vmatpush.msra.mxu0 %v822
        %848 = vmatpush.msra.mxu0 %v821
        %849 = vmatpush.msra.mxu0 %v820
        %850 = vmatmul.f32.gmra.mxu0 %v829
        %v851 = vpop.f32.mrf.mxu0
        %v852 = vadd.f32 %v826, %v851
        %853 = vmatmul.f32.gmra.mxu0 %v832
        %v854 = vpop.f32.mrf.mxu0
        %v855 = vadd.f32 %v826, %v854
        %856 = vdwg.mxu0
        %v857 = vlaneseq
        %v858 = vand.u32 %v857, 127
        %vm859 = vcmp.lt.s32.totalorder %v858, 1
        %v860 = vmax.f32 %v852, 0.0
        %v861 = vmax.f32 %v855, 0.0
        %vm862 = vcmp.ne.f32.partialorder %v852, %v852
        %vm863 = vcmp.ne.f32.partialorder %v855, %v855
        %v864 = vadd.f32 %v852, 0.0
        %v865 = vadd.f32 %v855, 0.0
        %v866 = vand.u32 2147483647, %v852
        %v867 = vand.u32 2147483647, %v855
        %v868 = vsub.f32 0.0, %v866
        %v869 = vsub.f32 0.0, %v867
        %v870 = vmul.f32 %v868, 1.442695
        %v871 = vpow.pop %v870
        %v872 = vmul.f32 %v869, 1.442695
        %v873 = vpow.pop %v872
        %v874 = vadd.f32 %v871, 1.0
        %v875 = vlog2.pop %v874
        %v876 = vmul.f32 %v875, 0.6931472
        %v877 = vmul.f32 -0.5, %v871
        %v878 = vadd.f32 %v877, 1.0
        %v879 = vmul.f32 %v878, %v871
        %v880 = vand.u32 2147483647, %v871
        %vm881 = vcmp.lt.f32.partialorder %v880, 0.0004427343
        %v882 = vsel %vm881, %v879, %v876
        %v883 = vadd.f32 %v873, 1.0
        %v884 = vlog2.pop %v883
        %v885 = vmul.f32 %v884, 0.6931472
        %v886 = vmul.f32 -0.5, %v873
        %v887 = vadd.f32 %v886, 1.0
        %v888 = vmul.f32 %v887, %v873
        %v889 = vand.u32 2147483647, %v873
        %vm890 = vcmp.lt.f32.partialorder %v889, 0.0004427343
        %v891 = vsel %vm890, %v888, %v885
        %v892 = vadd.f32 %v860, %v882
        %v893 = vadd.f32 %v861, %v891
        %v894 = vsel %vm862, %v864, %v892
        %v895 = vsel %vm863, %v865, %v893
        %v896 = vadd.f32 %v894, 0.1
        %v897 = vadd.f32 %v895, 0.1
        %v898 = vsel %vm859, %v852, %v896
        %v899 = vsel %vm859, %v855, %v897
        %900 = vst.msk [vmem:[%s572] sm:$0xff] %vm742, %v898
        %vm901 = vcmask 9216
        %902 = vst.msk [vmem:[%s572 + $0x8] sm:$0x3] %vm901, %v899
        %p903 = scmp.lt.s32.totalorder %s28, 1
        %s904 = scalar_select %p903, %s28, 1
        %s905 = smul.addr %s904, 2
        %s906 = smul.addr %s905, 8
        %s907 = scalar_lea.vmem %s16, %s906
        // Predicated region
        $region89: #{tpu_custom_call.1} parent=83 // pred_check
          %p908 = pneg %p397
        $region90: #{tpu_custom_call.1} parent=83 // pred_check_branch
          %910 = sbr.rel (%p908) target = $region92
        $region91: #{tpu_custom_call.1} parent=83 // pred_region
          _
        $region92: #{tpu_custom_call.1} parent=83 // pred_fallthru
          _
      $region84: #{tpu_custom_call.1} parent=5 // pred_fallthru
        _
      %p911 = scmp.le.s32.totalorder 2, %s23
      // Predicated region
      $region93: #{tpu_custom_call.1} parent=5 // pred_check
        %p912 = pneg %p911
      $region94: #{tpu_custom_call.1} parent=5 // pred_check_branch
        %914 = sbr.rel (%p912) target = $region96
      $region95: #{tpu_custom_call.1} parent=5 // pred_region
        %s915 = ssub.s32 %s23, 2
        // Predicated region
        $region97: #{tpu_custom_call.1} parent=95 // pred_check
          %p916 = pneg %p403
        $region98: #{tpu_custom_call.1} parent=95 // pred_check_branch
          %918 = sbr.rel (%p916) target = $region100
        $region99: #{tpu_custom_call.1} parent=95 // pred_region
          %p919 = scmp.lt.s32.totalorder %s29, 1
          %s920 = scalar_select %p919, %s29, 1
          %s921 = smul.addr %s920, 2
          %s922 = smul.addr %s921, 8
          %s923 = scalar_lea.vmem %s16, %s922
        $region100: #{tpu_custom_call.1} parent=95 // pred_fallthru
          _
      $region96: #{tpu_custom_call.1} parent=5 // pred_fallthru
        _
    $region6: #{tpu_custom_call.1} parent=1 // loop_footer
      %s27 = sadd.s32 1, %s23
    $region7: #{tpu_custom_call.1} parent=1 // loop_footer_branch
      %22 = sbr.rel target = $region3
    $region8: #{tpu_custom_call.1} parent=1 // loop_exit
      _
    %924 = vsyncpa [#allocation3], 1
    %s925 = scalar_lea.sflag [#allocation3], 1
    %926 = vsyncpa %s925, 1

</llo_original>
